<compile_context>
chip_gen: v7x
topology: tpu7x:2x2x1
jax: 0.10.0
libtpu: 0.0.40
codegen_flags: <defaults>
</compile_context>

<pallas_src>
import math

import jax
import jax.numpy as jnp
from jax.experimental import pallas as pl
from jax.experimental.pallas import tpu as pltpu


# ---------------------------------------------------------------------------
# Buffer setup — mirrors PositionalEncoding.__init__ exactly.
# ---------------------------------------------------------------------------
def make_positional_encoding_table(d_model: int, max_len: int = 5000,
                                   dtype=jnp.float32) -> jnp.ndarray:
    """Returns pe with shape (max_len, 1, d_model), matching register_buffer('pe')."""
    position = jnp.arange(0, max_len, dtype=jnp.float32)[:, None]              # (max_len, 1)
    div_term = jnp.exp(
        jnp.arange(0, d_model, 2, dtype=jnp.float32) * (-math.log(10000.0) / d_model)
    )                                                                            # (d_model//2,)
    pe = jnp.zeros((max_len, d_model), dtype=jnp.float32)
    pe = pe.at[:, 0::2].set(jnp.sin(position * div_term))
    pe = pe.at[:, 1::2].set(jnp.cos(position * div_term))
    # Build ONCE in the run dtype so the forward never pays a per-call pe cast/extra pass.
    return pe[:, None, :].astype(dtype)                                         # (max_len, 1, d_model)


# ---------------------------------------------------------------------------
# Kernel: x[s, b, d] + pe[s, d]  (broadcast over batch, no temporaries)
# ---------------------------------------------------------------------------
def _pe_add_kernel(x_ref, pe_ref, o_ref):
    # x_ref / o_ref : (ts, tb, d_model)   lane-dense blocks (last dim = full d_model)
    # pe_ref        : (ts, 1,  d_model)   sublane-broadcast add, no VMEM copy of pe
    o_ref[...] = x_ref[...] + pe_ref[...]


# ---------------------------------------------------------------------------
# Tiling helpers
# ---------------------------------------------------------------------------
def _sublane_multiple(dtype) -> int:
    bits = jnp.dtype(dtype).itemsize * 8
    if bits >= 32:
        return 8
    if bits == 16:
        return 16
    return 32


def _pick_tiles(seq_len: int, batch: int, d_model: int, dtype,
                target_bytes: int = 4 << 20) -> tuple[int, int]:
    """Pick (seq_tile, batch_tile): ~target_bytes x-blocks, >=4 seq blocks when possible."""
    itemsize = jnp.dtype(dtype).itemsize
    sub = _sublane_multiple(dtype)

    # Batch tile: full batch by default (dense (batch, d_model) sublane/lane tile).
    # Split only if a thin 8-row full-batch slab would already exceed the budget,
    # and only into sublane-aligned chunks that divide batch evenly.
    tb = batch
    if batch > sub and batch % sub == 0 and 8 * batch * d_model * itemsize > target_bytes:
        tb = max(sub, ((target_bytes // (8 * d_model * itemsize)) // sub) * sub)
        while tb > sub and batch % tb != 0:
            tb -= sub
        tb = max(tb, sub)

    row_bytes = max(1, tb * d_model * itemsize)
    ts = max(1, target_bytes // row_bytes)
    # Keep >=4 blocks along seq so DMA-in/compute/DMA-out overlap and v7x's two
    # TensorCores each get >=2 blocks (the max(8, ...) keeps toy shapes sane).
    ts = min(ts, max(8, pl.cdiv(seq_len, 4)))
    ts = min(ts, seq_len)
    if ts >= 8:
        ts = (ts // 8) * 8
    return int(ts), int(tb)


# ---------------------------------------------------------------------------
# Forward wrapper
# ---------------------------------------------------------------------------
def positional_encoding_forward(x: jnp.ndarray, pe: jnp.ndarray, *,
                                donate_x: bool = False,
                                seq_tile: int | None = None,
                                batch_tile: int | None = None,
                                target_block_bytes: int = 4 << 20) -> jnp.ndarray:
    """x: (seq_len, batch, d_model); pe: (max_len, 1, d_model). Returns x + pe[:seq_len]."""
    seq_len, batch, d_model = x.shape
    max_len = pe.shape[0]
    if pe.shape != (max_len, 1, d_model):
        raise ValueError(f"pe has shape {pe.shape}, expected ({max_len}, 1, {d_model})")
    if seq_len > max_len:
        raise ValueError(f"seq_len={seq_len} exceeds max_len={max_len}")
    if pe.dtype != x.dtype:
        pe = pe.astype(x.dtype)   # fallback only; build the table in the run dtype

    ts, tb = _pick_tiles(seq_len, batch, d_model, x.dtype, target_block_bytes)
    if seq_tile is not None:
        ts = int(seq_tile)
    if batch_tile is not None:
        tb = int(batch_tile)

    grid = (pl.cdiv(seq_len, ts), pl.cdiv(batch, tb))

    itemsize = jnp.dtype(x.dtype).itemsize
    x_block_bytes = ts * tb * d_model * itemsize
    pe_block_bytes = ts * d_model * jnp.dtype(pe.dtype).itemsize
    # x & out double-buffered by the BlockSpec pipeline, pe double-buffered too.
    est_vmem = 2 * 2 * x_block_bytes + 2 * pe_block_bytes
    # Raise v5e's 16 MiB scoped default; stay well under v7x's 64 MiB physical VMEM.
    vmem_limit = int(min(48 << 20, max(2 * est_vmem, 32 << 20)))

    out = pl.pallas_call(
        _pe_add_kernel,
        out_shape=jax.ShapeDtypeStruct((seq_len, batch, d_model), x.dtype),
        grid=grid,
        in_specs=[
            # x: streamed (ts, tb, d_model) blocks in native layout (lane-dense d_model).
            pl.BlockSpec((ts, tb, d_model), lambda i, b: (i, b, 0)),
            # pe: block index constant in b -> stays resident across the batch axis;
            # only the first ceil(seq_len/ts) blocks of the buffer are ever DMA'd.
            pl.BlockSpec((ts, 1, d_model), lambda i, b: (i, 0, 0)),
        ],
        out_specs=pl.BlockSpec((ts, tb, d_model), lambda i, b: (i, b, 0)),
        compiler_params=pltpu.CompilerParams(
            dimension_semantics=("parallel", "parallel"),   # megacore sharding on v7x
            vmem_limit_bytes=vmem_limit,
        ),
        input_output_aliases=({0: 0} if donate_x else {}),
    )(x, pe)
    return out


# ---------------------------------------------------------------------------
# Demo / self-check
# ---------------------------------------------------------------------------
if __name__ == "__main__":
    SEQ_LEN, BATCH, D_MODEL, MAX_LEN = 8, 2, 32, 64

    key = jax.random.PRNGKey(0)
    x = jax.random.normal(key, (SEQ_LEN, BATCH, D_MODEL), dtype=jnp.float32)
    pe = make_positional_encoding_table(D_MODEL, MAX_LEN, dtype=x.dtype)   # (MAX_LEN, 1, D_MODEL)

    out = jax.block_until_ready(positional_encoding_forward(x, pe))
    ref = x + pe[:SEQ_LEN]                     # broadcast (S,1,D) -> (S,B,D)
    assert out.shape == (SEQ_LEN, BATCH, D_MODEL)
    assert out.dtype == x.dtype
    assert jnp.allclose(out, ref, atol=1e-6, rtol=1e-6)

    # Multi-block grid along the sequence axis (3 blocks of 8 rows).
    SEQ2 = 24
    x2 = jax.random.normal(jax.random.PRNGKey(1), (SEQ2, BATCH, D_MODEL), dtype=jnp.float32)
    out2 = jax.block_until_ready(positional_encoding_forward(x2, pe, seq_tile=8))
    assert jnp.allclose(out2, x2 + pe[:SEQ2], atol=1e-6, rtol=1e-6)

    # bf16 path: table built once in the run dtype, same tiled grid.
    pe16 = make_positional_encoding_table(D_MODEL, MAX_LEN, dtype=jnp.bfloat16)
    x3 = x2.astype(jnp.bfloat16)
    out3 = jax.block_until_ready(positional_encoding_forward(x3, pe16, seq_tile=8))
    assert out3.dtype == jnp.bfloat16
    assert jnp.allclose(out3.astype(jnp.float32),
                        (x3 + pe16[:SEQ2]).astype(jnp.float32), atol=1e-2, rtol=1e-2)

    print("KERNEL_OK")
</pallas_src>

<mosaic_0001>
module attributes {stable_mosaic.version = 11 : i64} {
  func.func @_pe_add_kernel(%arg0: i32, %arg1: i32, %arg2: memref<8x2x32xf32, #tpu.memory_space<vmem>>, %arg3: memref<8x1x32xf32, #tpu.memory_space<vmem>>, %arg4: memref<8x2x32xf32, #tpu.memory_space<vmem>>) attributes {dimension_semantics = [#tpu.dimension_semantics<parallel>, #tpu.dimension_semantics<parallel>], iteration_bounds = array<i64: 1, 1>, scalar_prefetch = 0 : i64, scratch_operands = 0 : i64, tpu.core_type = #tpu.core_type<tc>, window_params = [{transform_indices = @transform_0, window_bounds = array<i64: 8, 2, 32>}, {transform_indices = @transform_1, window_bounds = array<i64: 8, 1, 32>}, {transform_indices = @transform_2, window_bounds = array<i64: 8, 2, 32>}]} {
    %c0 = arith.constant 0 : index
    %c0_0 = arith.constant 0 : index
    %c0_1 = arith.constant 0 : index
    %0 = vector.load %arg2[%c0, %c0_0, %c0_1] : memref<8x2x32xf32, #tpu.memory_space<vmem>>, vector<8x2x32xf32>
    %c0_2 = arith.constant 0 : index
    %c0_3 = arith.constant 0 : index
    %c0_4 = arith.constant 0 : index
    %1 = vector.load %arg3[%c0_2, %c0_3, %c0_4] : memref<8x1x32xf32, #tpu.memory_space<vmem>>, vector<8x1x32xf32>
    %2 = vector.broadcast %1 : vector<8x1x32xf32> to vector<8x2x32xf32>
    %3 = arith.addf %0, %2 : vector<8x2x32xf32>
    %c0_5 = arith.constant 0 : index
    %c0_6 = arith.constant 0 : index
    %c0_7 = arith.constant 0 : index
    %4 = vector.load %arg4[%c0_5, %c0_6, %c0_7] : memref<8x2x32xf32, #tpu.memory_space<vmem>>, vector<8x2x32xf32>
    tpu.vector_store %arg4[%c0_5, %c0_6, %c0_7], %3 {strides = array<i32>} : memref<8x2x32xf32, #tpu.memory_space<vmem>>, vector<8x2x32xf32>,
    return
  }
  func.func @transform_0(%arg0: i32, %arg1: i32) -> (i32, i32, i32) {
    %c0_i32 = arith.constant 0 : i32
    %c0_i32_0 = arith.constant 0 : i32
    return %arg0, %arg1, %c0_i32 : i32, i32, i32
  }
  func.func @transform_1(%arg0: i32, %arg1: i32) -> (i32, i32, i32) {
    %c0_i32 = arith.constant 0 : i32
    %c0_i32_0 = arith.constant 0 : i32
    %c0_i32_1 = arith.constant 0 : i32
    return %arg0, %c0_i32, %c0_i32_0 : i32, i32, i32
  }
  func.func @transform_2(%arg0: i32, %arg1: i32) -> (i32, i32, i32) {
    %c0_i32 = arith.constant 0 : i32
    %c0_i32_0 = arith.constant 0 : i32
    return %arg0, %arg1, %c0_i32 : i32, i32, i32
  }
}

</mosaic_0001>

<llo_original>
// kernel: tpu_custom_call.1
$region0: #{tpu_custom_call.1}
  #allocation0 [shape = 'u32[]', space=smem, size = 0x4, offset = 0x4, fixed_abs, tag = 'smem constant byte address 0x4 - core index']
  #allocation1 [shape = 'u32[144,128]{1,0:T(1,128)}', space=vmem, size = 0x12000, scoped, tag = 'internal scratch']
  %s0 = inlined_call_operand.vmem [shape: f32[8,2,32], index: 0, kind: input, shape index: {}]
  %s1 = inlined_call_operand.vmem [shape: f32[64,1,32], index: 1, kind: input, shape index: {}]
  %s2 = inlined_call_operand.hbm [shape: f32[8,2,32], index: 2, kind: output, shape index: {}]
  %s3 = sld [smem:[#allocation0]]
  $region18: #{tpu_custom_call.1} parent=0
    _
  %s5 = ssub.s32 1, %s3
  %s6 = scalar_select 0, %s5, %s3
  $region1: #{tpu_custom_call.1} parent=0
    #allocation2 [shape = 'u8[8192]{0}', space=vmem, size = 0x2000, scoped, tag = 'output window, operand 0, single buffered']
    #allocation3 [shape = 's32[1]{0}', space=sflag, size = 0x4, scoped, tag = 'scoped memory for tpu_custom_call.1']
    %7 = vsyncpa [#allocation3], 0
    // Predicated region
    $region2: #{tpu_custom_call.1} parent=1 // pred_check
      _
    $region3: #{tpu_custom_call.1} parent=1 // pred_check_branch
      %9 = sbr.rel (0) target = $region5
    $region4: #{tpu_custom_call.1} parent=1 // pred_region
      _
    $region5: #{tpu_custom_call.1} parent=1 // pred_fallthru
      _
    // Predicated region
    $region6: #{tpu_custom_call.1} parent=1 // pred_check
      _
    $region7: #{tpu_custom_call.1} parent=1 // pred_check_branch
      %11 = sbr.rel (0) target = $region9
    $region8: #{tpu_custom_call.1} parent=1 // pred_region
      _
    $region9: #{tpu_custom_call.1} parent=1 // pred_fallthru
      _
    %v12 = vld [vmem:[%s0] sm:$0x3]
    %v13 = vld [vmem:[%s0 + $0x2] sm:$0x3]
    %v14 = vld [vmem:[%s0 + $0x4] sm:$0x3]
    %v15 = vld [vmem:[%s0 + $0x6] sm:$0x3]
    %v16 = vld [vmem:[%s0 + $0x8] sm:$0x3]
    %v17 = vld [vmem:[%s0 + $0xa] sm:$0x3]
    %v18 = vld [vmem:[%s0 + $0xc] sm:$0x3]
    %v19 = vld [vmem:[%s0 + $0xe] sm:$0x3]
    %v20 = vld [vmem:[%s1] sm:$0x1]
    %v21 = vld [vmem:[%s1 + $0x1] sm:$0x1]
    %v22 = vld [vmem:[%s1 + $0x2] sm:$0x1]
    %v23 = vld [vmem:[%s1 + $0x3] sm:$0x1]
    %v24 = vld [vmem:[%s1 + $0x4] sm:$0x1]
    %v25 = vld [vmem:[%s1 + $0x5] sm:$0x1]
    %v26 = vld [vmem:[%s1 + $0x6] sm:$0x1]
    %v27 = vld [vmem:[%s1 + $0x7] sm:$0x1]
    %v36 = vlaneseq
    %v37 = vshrl.u32 %v36, 7
    %v38 = vsub.s32 0, %v37
    %v39 = vrot.slane %v20, %v38
    %v40 = vlaneseq
    %v41 = vshrl.u32 %v40, 7
    %v42 = vsub.s32 0, %v41
    %v43 = vrot.slane %v21, %v42
    %v44 = vlaneseq
    %v45 = vshrl.u32 %v44, 7
    %v46 = vsub.s32 0, %v45
    %v47 = vrot.slane %v22, %v46
    %v48 = vlaneseq
    %v49 = vshrl.u32 %v48, 7
    %v50 = vsub.s32 0, %v49
    %v51 = vrot.slane %v23, %v50
    %v52 = vlaneseq
    %v53 = vshrl.u32 %v52, 7
    %v54 = vsub.s32 0, %v53
    %v55 = vrot.slane %v24, %v54
    %v56 = vlaneseq
    %v57 = vshrl.u32 %v56, 7
    %v58 = vsub.s32 0, %v57
    %v59 = vrot.slane %v25, %v58
    %v60 = vlaneseq
    %v61 = vshrl.u32 %v60, 7
    %v62 = vsub.s32 0, %v61
    %v63 = vrot.slane %v26, %v62
    %v64 = vlaneseq
    %v65 = vshrl.u32 %v64, 7
    %v66 = vsub.s32 0, %v65
    %v67 = vrot.slane %v27, %v66
    %v76 = vadd.f32 %v12, %v39
    %v77 = vadd.f32 %v13, %v43
    %v78 = vadd.f32 %v14, %v47
    %v79 = vadd.f32 %v15, %v51
    %v80 = vadd.f32 %v16, %v55
    %v81 = vadd.f32 %v17, %v59
    %v82 = vadd.f32 %v18, %v63
    %v83 = vadd.f32 %v19, %v67
    %vm84 = vcmask 254976
    %85 = vst.msk [vmem:[#allocation2] sm:$0x3] %vm84, %v76
    %86 = vst.msk [vmem:[#allocation2 + $0x2] sm:$0x3] %vm84, %v77
    %87 = vst.msk [vmem:[#allocation2 + $0x4] sm:$0x3] %vm84, %v78
    %88 = vst.msk [vmem:[#allocation2 + $0x6] sm:$0x3] %vm84, %v79
    %89 = vst.msk [vmem:[#allocation2 + $0x8] sm:$0x3] %vm84, %v80
    %90 = vst.msk [vmem:[#allocation2 + $0xa] sm:$0x3] %vm84, %v81
    %91 = vst.msk [vmem:[#allocation2 + $0xc] sm:$0x3] %vm84, %v82
    %92 = vst.msk [vmem:[#allocation2 + $0xe] sm:$0x3] %vm84, %v83
    // Predicated region
    $region10: #{tpu_custom_call.1} parent=1 // pred_check
      _
    $region11: #{tpu_custom_call.1} parent=1 // pred_check_branch
      %94 = sbr.rel (0) target = $region13
    $region12: #{tpu_custom_call.1} parent=1 // pred_region
      %s96 = ssub.s32 256, 256
      %97 = vsyncadd [#allocation3], %s96
      %s98 = sshll.u32 [#allocation2], 4
      %s99 = int_to_ptr.vmem [resolvable:$true] %s98
      %104 = dma.vmem_to_hbm [thread:$0]  %s99, 256, %s2, [#allocation3], 32, 32, 2
    $region13: #{tpu_custom_call.1} parent=1 // pred_fallthru
      _
    // Predicated region
    $region14: #{tpu_custom_call.1} parent=1 // pred_check
      _
    $region15: #{tpu_custom_call.1} parent=1 // pred_check_branch
      %106 = sbr.rel (0) target = $region17
    $region16: #{tpu_custom_call.1} parent=1 // pred_region
      %107 = dma.done [#allocation3], 256
    $region17: #{tpu_custom_call.1} parent=1 // pred_fallthru
      _
    %108 = vsyncpa [#allocation3], 1

</llo_original>
